<compile_context>
chip_gen: v5e
topology: v5e:2x2
jax: 0.10.0
libtpu: 0.0.40
codegen_flags: <defaults>
</compile_context>

<pallas_src>
import functools

import jax
import jax.numpy as jnp
from jax.experimental import pallas as pl
from jax.experimental.pallas import tpu as pltpu

SOFTPLUS_BETA = 7.5
SOFTPLUS_THRESHOLD = 20.0  # PyTorch default: linear when beta*x > threshold


def _softplus(h):
    # PyTorch Softplus(beta, threshold):
    #   out = h                           if beta*h > threshold
    #       = log1p(exp(beta*h)) / beta   otherwise
    bh = SOFTPLUS_BETA * h
    safe_bh = jnp.minimum(bh, SOFTPLUS_THRESHOLD)  # avoid overflow in exp
    return jnp.where(bh > SOFTPLUS_THRESHOLD, h,
                     jnp.log1p(jnp.exp(safe_bh)) * (1.0 / SOFTPLUS_BETA))


def _mlp_kernel(x_ref, w1t_ref, b1_ref, w2t_ref, b2_ref, o_ref):
    # Transposed layout: rows on lanes (lane-dense), features on sublanes.
    #   x_ref:   (in_dim,  TM)
    #   w1t_ref: (hidden, in_dim)   b1_ref: (hidden, 1)
    #   w2t_ref: (out,    hidden)   b2_ref: (out, 1)
    #   o_ref:   (out, TM)
    h = jnp.dot(w1t_ref[...], x_ref[...], preferred_element_type=jnp.float32)
    h = h + b1_ref[...]                      # (hidden, 1) broadcast over lanes
    sp = _softplus(h)
    y = jnp.dot(w2t_ref[...], sp.astype(w2t_ref.dtype),
                preferred_element_type=jnp.float32)
    y = y + b2_ref[...]
    o_ref[...] = y.astype(o_ref.dtype)


def _round_up(x, m):
    return ((x + m - 1) // m) * m


def _pick_tm(M, in_dim, hidden_dim, out_dim, itemsize,
             vmem_budget=8 * 1024 * 1024, tm_cap=4096):
    """Pick a lane-dense row tile: multiple of 128, as big as fits the budget."""
    # Double-buffered x/out tiles plus f32 activation working set per row.
    per_row = 2 * (in_dim + out_dim) * itemsize + 2 * hidden_dim * 4
    tm = (vmem_budget // max(per_row, 1)) // 128 * 128
    tm = max(128, min(tm, tm_cap))
    tm = min(tm, _round_up(M, 128))          # don't pad tiny problems past one tile
    return int(tm)


@functools.partial(jax.jit, static_argnames=("tm",))
def mlp_embedding(x, w1, b1, w2, b2, *, tm=None):
    """x: (B, N, input_dim) -> (B, N, output_dim).

    w1: (input_dim, hidden_dim), b1: (hidden_dim,)
    w2: (hidden_dim, output_dim), b2: (output_dim,)
    """
    B, N, in_dim = x.shape
    hidden_dim = w1.shape[1]
    out_dim = w2.shape[1]
    M = B * N
    itemsize = jnp.dtype(x.dtype).itemsize

    if tm is None:
        tm = _pick_tm(M, in_dim, hidden_dim, out_dim, itemsize)
    tm = max(128, _round_up(tm, 128))
    m_padded = _round_up(M, tm)
    num_tiles = m_padded // tm

    # Wrapper-side layout plumbing: pad rows to a tile multiple and transpose so
    # rows map to lanes.  Zero rows flow through the MLP to finite values and
    # are sliced away below.
    x2d = x.reshape(M, in_dim)
    xt = jnp.pad(x2d, ((0, m_padded - M), (0, 0))).T      # (in_dim, m_padded)
    w1t = w1.T                                            # (hidden, in_dim)
    w2t = w2.T                                            # (out, hidden)
    b1c = b1.reshape(hidden_dim, 1)
    b2c = b2.reshape(out_dim, 1)

    cost = pl.CostEstimate(
        flops=2 * M * (in_dim * hidden_dim + hidden_dim * out_dim),
        transcendentals=2 * M * hidden_dim,               # exp + log1p per hidden elem
        bytes_accessed=itemsize * (M * in_dim + M * out_dim
                                   + in_dim * hidden_dim + hidden_dim
                                   + hidden_dim * out_dim + out_dim))

    # VMEM actually needed: double-buffered x/out tiles + resident weights +
    # activation scratch; generous headroom but capped for v7x's 64 MiB VMEM.
    tile_bytes = 2 * (in_dim + out_dim) * tm * itemsize + 2 * hidden_dim * tm * 4
    weight_bytes = 2 * itemsize * (in_dim * hidden_dim + hidden_dim
                                   + hidden_dim * out_dim + out_dim)
    vmem_limit = min(48 * 1024 * 1024,
                     max(16 * 1024 * 1024, 4 * (tile_bytes + weight_bytes)))

    out_t = pl.pallas_call(
        _mlp_kernel,
        out_shape=jax.ShapeDtypeStruct((out_dim, m_padded), x.dtype),
        grid_spec=pltpu.PrefetchScalarGridSpec(
            num_scalar_prefetch=0,
            grid=(num_tiles,),
            in_specs=[
                pl.BlockSpec((in_dim, tm), lambda i: (0, i)),          # x^T tile
                pl.BlockSpec((hidden_dim, in_dim), lambda i: (0, 0)),  # W1^T (resident)
                pl.BlockSpec((hidden_dim, 1), lambda i: (0, 0)),       # b1   (resident)
                pl.BlockSpec((out_dim, hidden_dim), lambda i: (0, 0)), # W2^T (resident)
                pl.BlockSpec((out_dim, 1), lambda i: (0, 0)),          # b2   (resident)
            ],
            out_specs=pl.BlockSpec((out_dim, tm), lambda i: (0, i)),
        ),
        compiler_params=pltpu.CompilerParams(
            dimension_semantics=("parallel",),   # 2x on v7x dual-TC; neutral elsewhere
            vmem_limit_bytes=int(vmem_limit)),
        cost_estimate=cost,
    )(xt, w1t, b1c, w2t, b2c)

    out2d = out_t[:, :M].T                                # (M, out_dim)
    return out2d.reshape(B, N, out_dim)


def init_params(key, input_dim, hidden_dim, output_dim, dtype=jnp.float32):
    """Deterministic init mimicking nn.Linear's uniform(-1/sqrt(fan_in), 1/sqrt(fan_in))."""
    k1, k2, k3, k4 = jax.random.split(key, 4)
    lim1 = 1.0 / jnp.sqrt(input_dim)
    lim2 = 1.0 / jnp.sqrt(hidden_dim)
    # stored as (in_features, out_features); wrapper transposes for the kernel
    w1 = jax.random.uniform(k1, (input_dim, hidden_dim), dtype, -lim1, lim1)
    b1 = jax.random.uniform(k2, (hidden_dim,), dtype, -lim1, lim1)
    w2 = jax.random.uniform(k3, (hidden_dim, output_dim), dtype, -lim2, lim2)
    b2 = jax.random.uniform(k4, (output_dim,), dtype, -lim2, lim2)
    return w1, b1, w2, b2


if __name__ == "__main__":
    input_dim, hidden_dim, output_dim = 4, 32, 16
    B, N = 2, 8

    key = jax.random.PRNGKey(0)
    kx, kp = jax.random.split(key)
    x = jax.random.normal(kx, (B, N, input_dim), jnp.float32)
    w1, b1, w2, b2 = init_params(kp, input_dim, hidden_dim, output_dim)

    out = mlp_embedding(x, w1, b1, w2, b2)
    out = jax.block_until_ready(out)

    # Reference check in plain JAX (same softplus semantics as PyTorch).
    h = x.reshape(-1, input_dim) @ w1 + b1
    bh = SOFTPLUS_BETA * h
    sp = jnp.where(bh > SOFTPLUS_THRESHOLD, h,
                   jnp.log1p(jnp.exp(jnp.minimum(bh, SOFTPLUS_THRESHOLD))) / SOFTPLUS_BETA)
    ref = (sp @ w2 + b2).reshape(B, N, output_dim)

    assert out.shape == (B, N, output_dim)
    assert jnp.allclose(out, ref, atol=1e-5, rtol=1e-5)

    print("KERNEL_OK")
</pallas_src>

<mosaic_0001>
module attributes {stable_mosaic.version = 11 : i64} {
  func.func @_mlp_kernel(%arg0: i32, %arg1: memref<4x128xf32, #tpu.memory_space<vmem>>, %arg2: memref<32x4xf32, #tpu.memory_space<vmem>>, %arg3: memref<32x1xf32, #tpu.memory_space<vmem>>, %arg4: memref<16x32xf32, #tpu.memory_space<vmem>>, %arg5: memref<16x1xf32, #tpu.memory_space<vmem>>, %arg6: memref<16x128xf32, #tpu.memory_space<vmem>>) attributes {dimension_semantics = [#tpu.dimension_semantics<parallel>], iteration_bounds = array<i64: 1>, scalar_prefetch = 0 : i64, scratch_operands = 0 : i64, tpu.core_type = #tpu.core_type<tc>, window_params = [{transform_indices = @transform_0, window_bounds = array<i64: 4, 128>}, {pipeline_mode = #tpu.pipeline_mode<synchronous>, transform_indices = @transform_1, window_bounds = array<i64: 32, 4>}, {pipeline_mode = #tpu.pipeline_mode<synchronous>, transform_indices = @transform_2, window_bounds = array<i64: 32, 1>}, {pipeline_mode = #tpu.pipeline_mode<synchronous>, transform_indices = @transform_3, window_bounds = array<i64: 16, 32>}, {pipeline_mode = #tpu.pipeline_mode<synchronous>, transform_indices = @transform_4, window_bounds = array<i64: 16, 1>}, {transform_indices = @transform_5, window_bounds = array<i64: 16, 128>}]} {
    %c0 = arith.constant 0 : index
    %c0_0 = arith.constant 0 : index
    %0 = vector.load %arg2[%c0, %c0_0] : memref<32x4xf32, #tpu.memory_space<vmem>>, vector<32x4xf32>
    %c0_1 = arith.constant 0 : index
    %c0_2 = arith.constant 0 : index
    %1 = vector.load %arg1[%c0_1, %c0_2] : memref<4x128xf32, #tpu.memory_space<vmem>>, vector<4x128xf32>
    %cst = arith.constant dense<0.000000e+00> : vector<32x128xf32>
    %2 = tpu.matmul %0, %1, %cst {dimension_numbers = #tpu.dot_dimension_numbers<[1], [0], [0], [1], [0, 0, 1, 1], [], []>} : vector<32x4xf32>, vector<4x128xf32>, vector<32x128xf32> -> vector<32x128xf32>
    %c0_3 = arith.constant 0 : index
    %c0_4 = arith.constant 0 : index
    %3 = vector.load %arg3[%c0_3, %c0_4] : memref<32x1xf32, #tpu.memory_space<vmem>>, vector<32x1xf32>
    %4 = vector.broadcast %3 : vector<32x1xf32> to vector<32x128xf32>
    %5 = arith.addf %2, %4 : vector<32x128xf32>
    %cst_5 = arith.constant 7.500000e+00 : f32
    %6 = vector.broadcast %cst_5 : f32 to vector<32x128xf32>
    %7 = arith.mulf %6, %5 : vector<32x128xf32>
    %cst_6 = arith.constant 2.000000e+01 : f32
    %8 = vector.broadcast %cst_6 : f32 to vector<32x128xf32>
    %9 = arith.minimumf %7, %8 : vector<32x128xf32>
    %cst_7 = arith.constant 2.000000e+01 : f32
    %10 = vector.broadcast %cst_7 : f32 to vector<32x128xf32>
    %11 = arith.cmpf ogt, %7, %10 : vector<32x128xf32>
    %12 = math.exp %9 : vector<32x128xf32>
    %13 = math.log1p %12 : vector<32x128xf32>
    %cst_8 = arith.constant 0.13333334 : f32
    %14 = vector.broadcast %cst_8 : f32 to vector<32x128xf32>
    %15 = arith.mulf %13, %14 : vector<32x128xf32>
    %16 = arith.select %11, %5, %15 : vector<32x128xi1>, vector<32x128xf32>
    %c0_9 = arith.constant 0 : index
    %c0_10 = arith.constant 0 : index
    %17 = vector.load %arg4[%c0_9, %c0_10] : memref<16x32xf32, #tpu.memory_space<vmem>>, vector<16x32xf32>
    %cst_11 = arith.constant dense<0.000000e+00> : vector<16x128xf32>
    %18 = tpu.matmul %17, %16, %cst_11 {dimension_numbers = #tpu.dot_dimension_numbers<[1], [0], [0], [1], [0, 0, 1, 1], [], []>} : vector<16x32xf32>, vector<32x128xf32>, vector<16x128xf32> -> vector<16x128xf32>
    %c0_12 = arith.constant 0 : index
    %c0_13 = arith.constant 0 : index
    %19 = vector.load %arg5[%c0_12, %c0_13] : memref<16x1xf32, #tpu.memory_space<vmem>>, vector<16x1xf32>
    %20 = vector.broadcast %19 : vector<16x1xf32> to vector<16x128xf32>
    %21 = arith.addf %18, %20 : vector<16x128xf32>
    %c0_14 = arith.constant 0 : index
    %c0_15 = arith.constant 0 : index
    %22 = vector.load %arg6[%c0_14, %c0_15] : memref<16x128xf32, #tpu.memory_space<vmem>>, vector<16x128xf32>
    tpu.vector_store %arg6[%c0_14, %c0_15], %21 {strides = array<i32>} : memref<16x128xf32, #tpu.memory_space<vmem>>, vector<16x128xf32>,
    return
  }
  func.func @transform_0(%arg0: i32) -> (i32, i32) {
    %c0_i32 = arith.constant 0 : i32
    %c0_i32_0 = arith.constant 0 : i32
    return %c0_i32, %arg0 : i32, i32
  }
  func.func @transform_1(%arg0: i32) -> (i32, i32) {
    %c0_i32 = arith.constant 0 : i32
    %c0_i32_0 = arith.constant 0 : i32
    %c0_i32_1 = arith.constant 0 : i32
    return %c0_i32, %c0_i32_0 : i32, i32
  }
  func.func @transform_2(%arg0: i32) -> (i32, i32) {
    %c0_i32 = arith.constant 0 : i32
    %c0_i32_0 = arith.constant 0 : i32
    %c0_i32_1 = arith.constant 0 : i32
    return %c0_i32, %c0_i32_0 : i32, i32
  }
  func.func @transform_3(%arg0: i32) -> (i32, i32) {
    %c0_i32 = arith.constant 0 : i32
    %c0_i32_0 = arith.constant 0 : i32
    %c0_i32_1 = arith.constant 0 : i32
    return %c0_i32, %c0_i32_0 : i32, i32
  }
  func.func @transform_4(%arg0: i32) -> (i32, i32) {
    %c0_i32 = arith.constant 0 : i32
    %c0_i32_0 = arith.constant 0 : i32
    %c0_i32_1 = arith.constant 0 : i32
    return %c0_i32, %c0_i32_0 : i32, i32
  }
  func.func @transform_5(%arg0: i32) -> (i32, i32) {
    %c0_i32 = arith.constant 0 : i32
    %c0_i32_0 = arith.constant 0 : i32
    return %c0_i32, %arg0 : i32, i32
  }
}

</mosaic_0001>

<llo_original>
// kernel: mlp_embedding.1
$region0: #{mlp_embedding.1}
  #allocation0 [shape = 'u32[]', space=smem, size = 0x4, offset = 0x4, fixed_abs, tag = 'smem constant byte address 0x4 - core index']
  #allocation1 [shape = 'u32[72,128]{1,0:T(1,128)}', space=vmem, size = 0x9000, scoped, tag = 'internal scratch']
  %s0 = inlined_call_operand.vmem [shape: f32[4,128], index: 0, kind: input, shape index: {}]
  %s1 = inlined_call_operand.vmem [shape: f32[32,4], index: 1, kind: input, shape index: {}]
  %s2 = inlined_call_operand.vmem [shape: f32[32,1], index: 2, kind: input, shape index: {}]
  %s3 = inlined_call_operand.vmem [shape: f32[16,32], index: 3, kind: input, shape index: {}]
  %s4 = inlined_call_operand.vmem [shape: f32[16,1], index: 4, kind: input, shape index: {}]
  %s5 = inlined_call_operand.vmem [shape: f32[16,128], index: 5, kind: output, shape index: {}]
  %s6 = sld [smem:[#allocation0]]
  $region30: #{mlp_embedding.1} parent=0
    _
  %s8 = ssub.s32 1, %s6
  %s9 = scalar_select 0, %s8, %s6
  // Predicated region
  $region2: #{mlp_embedding.1} parent=0 // pred_check
    _
  $region3: #{mlp_embedding.1} parent=0 // pred_check_branch
    %11 = sbr.rel (0) target = $region5
  $region4: #{mlp_embedding.1} parent=0 // pred_region
    _
  $region5: #{mlp_embedding.1} parent=0 // pred_fallthru
    _
  // Predicated region
  $region6: #{mlp_embedding.1} parent=0 // pred_check
    _
  $region7: #{mlp_embedding.1} parent=0 // pred_check_branch
    %13 = sbr.rel (0) target = $region9
  $region8: #{mlp_embedding.1} parent=0 // pred_region
    _
  $region9: #{mlp_embedding.1} parent=0 // pred_fallthru
    _
  // Predicated region
  $region10: #{mlp_embedding.1} parent=0 // pred_check
    _
  $region11: #{mlp_embedding.1} parent=0 // pred_check_branch
    %15 = sbr.rel (0) target = $region13
  $region12: #{mlp_embedding.1} parent=0 // pred_region
    _
  $region13: #{mlp_embedding.1} parent=0 // pred_fallthru
    _
  // Predicated region
  $region14: #{mlp_embedding.1} parent=0 // pred_check
    _
  $region15: #{mlp_embedding.1} parent=0 // pred_check_branch
    %17 = sbr.rel (0) target = $region17
  $region16: #{mlp_embedding.1} parent=0 // pred_region
    _
  $region17: #{mlp_embedding.1} parent=0 // pred_fallthru
    _
  // Predicated region
  $region18: #{mlp_embedding.1} parent=0 // pred_check
    _
  $region19: #{mlp_embedding.1} parent=0 // pred_check_branch
    %19 = sbr.rel (0) target = $region21
  $region20: #{mlp_embedding.1} parent=0 // pred_region
    _
  $region21: #{mlp_embedding.1} parent=0 // pred_fallthru
    _
  %v20 = vld [vmem:[%s1] sm:$0xff]
  %v21 = vld [vmem:[%s1 + $0x8] sm:$0xff]
  %v22 = vld [vmem:[%s1 + $0x10] sm:$0xff]
  %v23 = vld [vmem:[%s1 + $0x18] sm:$0xff]
  %v24 = vld [vmem:[%s0] sm:$0xf]
  %v25 = vld [vmem:[%s2] sm:$0xff]
  %v26 = vld [vmem:[%s2 + $0x8] sm:$0xff]
  %v27 = vld [vmem:[%s2 + $0x10] sm:$0xff]
  %v28 = vld [vmem:[%s2 + $0x18] sm:$0xff]
  %30 = vset.pattern.permute.xlu0 0
  %31 = vperm.xlu0 %30, %v25
  %v32 = vpop.permute.xlu0 %31
  %35 = vset.pattern.permute.xlu0 0
  %36 = vperm.xlu0 %35, %v26
  %v37 = vpop.permute.xlu0 %36
  %40 = vset.pattern.permute.xlu0 0
  %41 = vperm.xlu0 %40, %v27
  %v42 = vpop.permute.xlu0 %41
  %45 = vset.pattern.permute.xlu0 0
  %46 = vperm.xlu0 %45, %v28
  %v47 = vpop.permute.xlu0 %46
  %vm49 = vcmask 31744
  %v51 = vsel %vm49, %v20, 0
  %v54 = vsel %vm49, %v21, 0
  %v57 = vsel %vm49, %v22, 0
  %v60 = vsel %vm49, %v23, 0
  %vm62 = vcmask 1043456
  %v64 = vsel %vm62, %v24, 0
  %66 = vmatpush.msra.mxu0 0.0
  %67 = vmatpush.msra.mxu0 0.0
  %68 = vmatpush.msra.mxu0 0.0
  %69 = vmatpush.msra.mxu0 0.0
  %70 = vmatpush.msra.mxu0 0.0
  %71 = vmatpush.msra.mxu0 0.0
  %72 = vmatpush.msra.mxu0 0.0
  %73 = vmatpush.msra.mxu0 0.0
  %74 = vmatpush.msra.mxu0 0.0
  %75 = vmatpush.msra.mxu0 0.0
  %76 = vmatpush.msra.mxu0 0.0
  %77 = vmatpush.msra.mxu0 0.0
  %78 = vmatpush.msra.mxu0 0.0
  %79 = vmatpush.msra.mxu0 0.0
  %80 = vmatpush.msra.mxu0 0.0
  %81 = vmatpush.msra.mxu0 %v64
  %82 = vmatmul.f32.gmra.mxu0 %v51
  %v83 = vpop.f32.mrf.mxu0
  %v84 = vadd.f32 %v32, %v83
  %85 = vmatmul.f32.gmra.mxu0 %v54
  %v86 = vpop.f32.mrf.mxu0
  %v87 = vadd.f32 %v37, %v86
  %88 = vmatmul.f32.gmra.mxu0 %v57
  %v89 = vpop.f32.mrf.mxu0
  %v90 = vadd.f32 %v42, %v89
  %91 = vmatmul.f32.gmra.mxu0 %v60
  %v92 = vpop.f32.mrf.mxu0
  %v93 = vadd.f32 %v47, %v92
  %94 = vdwg.mxu0
  %v95 = vmul.f32 %v84, 7.5
  %v96 = vmul.f32 %v87, 7.5
  %v97 = vmul.f32 %v90, 7.5
  %v98 = vmul.f32 %v93, 7.5
  %v99 = vmin.f32 %v95, 20.0
  %v100 = vmin.f32 %v96, 20.0
  %v101 = vmin.f32 %v97, 20.0
  %v102 = vmin.f32 %v98, 20.0
  %vm103 = vcmp.gt.f32.partialorder %v95, 20.0
  %vm104 = vcmp.gt.f32.partialorder %v96, 20.0
  %vm105 = vcmp.gt.f32.partialorder %v97, 20.0
  %vm106 = vcmp.gt.f32.partialorder %v98, 20.0
  %v107 = vmul.f32 %v99, 1.442695
  %v108 = vpow.pop %v107
  %v109 = vmul.f32 %v100, 1.442695
  %v110 = vpow.pop %v109
  %v111 = vmul.f32 %v101, 1.442695
  %v112 = vpow.pop %v111
  %v113 = vmul.f32 %v102, 1.442695
  %v114 = vpow.pop %v113
  %v115 = vadd.f32 %v108, 1.0
  %v116 = vlog2.pop %v115
  %v117 = vmul.f32 %v116, 0.6931472
  %v118 = vmul.f32 -0.5, %v108
  %v119 = vadd.f32 %v118, 1.0
  %v120 = vmul.f32 %v119, %v108
  %v121 = vand.u32 2147483647, %v108
  %vm122 = vcmp.lt.f32.partialorder %v121, 0.0004427343
  %v123 = vsel %vm122, %v120, %v117
  %v124 = vadd.f32 %v110, 1.0
  %v125 = vlog2.pop %v124
  %v126 = vmul.f32 %v125, 0.6931472
  %v127 = vmul.f32 -0.5, %v110
  %v128 = vadd.f32 %v127, 1.0
  %v129 = vmul.f32 %v128, %v110
  %v130 = vand.u32 2147483647, %v110
  %vm131 = vcmp.lt.f32.partialorder %v130, 0.0004427343
  %v132 = vsel %vm131, %v129, %v126
  %v133 = vadd.f32 %v112, 1.0
  %v134 = vlog2.pop %v133
  %v135 = vmul.f32 %v134, 0.6931472
  %v136 = vmul.f32 -0.5, %v112
  %v137 = vadd.f32 %v136, 1.0
  %v138 = vmul.f32 %v137, %v112
  %v139 = vand.u32 2147483647, %v112
  %vm140 = vcmp.lt.f32.partialorder %v139, 0.0004427343
  %v141 = vsel %vm140, %v138, %v135
  %v142 = vadd.f32 %v114, 1.0
  %v143 = vlog2.pop %v142
  %v144 = vmul.f32 %v143, 0.6931472
  %v145 = vmul.f32 -0.5, %v114
  %v146 = vadd.f32 %v145, 1.0
  %v147 = vmul.f32 %v146, %v114
  %v148 = vand.u32 2147483647, %v114
  %vm149 = vcmp.lt.f32.partialorder %v148, 0.0004427343
  %v150 = vsel %vm149, %v147, %v144
  %v151 = vmul.f32 %v123, 0.13333334
  %v152 = vmul.f32 %v132, 0.13333334
  %v153 = vmul.f32 %v141, 0.13333334
  %v154 = vmul.f32 %v150, 0.13333334
  %v155 = vsel %vm103, %v84, %v151
  %v156 = vsel %vm104, %v87, %v152
  %v157 = vsel %vm105, %v90, %v153
  %v158 = vsel %vm106, %v93, %v154
  %v159 = vld [vmem:[%s3] sm:$0xff]
  %v160 = vld [vmem:[%s3 + $0x8] sm:$0xff]
  %v161 = vld [vmem:[%s4] sm:$0xff]
  %v162 = vld [vmem:[%s4 + $0x8] sm:$0xff]
  %164 = vset.pattern.permute.xlu0 0
  %165 = vperm.xlu0 %164, %v161
  %v166 = vpop.permute.xlu0 %165
  %169 = vset.pattern.permute.xlu0 0
  %170 = vperm.xlu0 %169, %v162
  %v171 = vpop.permute.xlu0 %170
  %vm173 = vcmask 261120
  %v175 = vsel %vm173, %v159, 0
  %v178 = vsel %vm173, %v160, 0
  %180 = vmatpush.msra.mxu0 0.0
  %181 = vmatpush.msra.mxu0 0.0
  %182 = vmatpush.msra.mxu0 0.0
  %183 = vmatpush.msra.mxu0 0.0
  %184 = vmatpush.msra.mxu0 0.0
  %185 = vmatpush.msra.mxu0 0.0
  %186 = vmatpush.msra.mxu0 0.0
  %187 = vmatpush.msra.mxu0 0.0
  %188 = vmatpush.msra.mxu0 0.0
  %189 = vmatpush.msra.mxu0 0.0
  %190 = vmatpush.msra.mxu0 0.0
  %191 = vmatpush.msra.mxu0 0.0
  %192 = vmatpush.msra.mxu0 %v158
  %193 = vmatpush.msra.mxu0 %v157
  %194 = vmatpush.msra.mxu0 %v156
  %195 = vmatpush.msra.mxu0 %v155
  %196 = vmatmul.f32.gmra.mxu0 %v175
  %v197 = vpop.f32.mrf.mxu0
  %v198 = vadd.f32 %v166, %v197
  %199 = vmatmul.f32.gmra.mxu0 %v178
  %v200 = vpop.f32.mrf.mxu0
  %v201 = vadd.f32 %v171, %v200
  %202 = vdwg.mxu0
  %203 = vst [vmem:[%s5] sm:$0xff] %v198
  %204 = vst [vmem:[%s5 + $0x8] sm:$0xff] %v201
  // Predicated region
  $region22: #{mlp_embedding.1} parent=0 // pred_check
    _
  $region23: #{mlp_embedding.1} parent=0 // pred_check_branch
    %206 = sbr.rel (0) target = $region25
  $region24: #{mlp_embedding.1} parent=0 // pred_region
    _
  $region25: #{mlp_embedding.1} parent=0 // pred_fallthru
    _
  // Predicated region
  $region26: #{mlp_embedding.1} parent=0 // pred_check
    _
  $region27: #{mlp_embedding.1} parent=0 // pred_check_branch
    %208 = sbr.rel (0) target = $region29
  $region28: #{mlp_embedding.1} parent=0 // pred_region
    _
  $region29: #{mlp_embedding.1} parent=0 // pred_fallthru
    _

</llo_original>
